<compile_context>
chip_gen: v7x
topology: tpu7x:2x2x1
jax: 0.10.0
libtpu: 0.0.40
codegen_flags: <defaults>
</compile_context>

<pallas_src>
import functools

import jax
import jax.numpy as jnp
from jax.experimental import pallas as pl
from jax.experimental.pallas import tpu as pltpu

_NEG_INF = -1e30


def _round_up(a: int, b: int) -> int:
    return (a + b - 1) // b * b


# ----------------- kernel 1: x -> Q (pre-scaled), K^T, V ----------------------

def _qkv_proj_kernel(x_ref, wqkv_ref, bqkv_ref, q_ref, kt_ref, v_ref, *, cout_p):
    # One fused [T, Cin_p] x [Cin_p, 3*Cout_p] MXU matmul per x tile.
    qkv = jnp.dot(x_ref[...], wqkv_ref[...],
                  preferred_element_type=jnp.float32) + bqkv_ref[...]
    q_ref[...] = qkv[:, :cout_p].astype(q_ref.dtype)
    # Transpose K once per KV tile here (amortized over all query tiles), so the
    # attention kernel does a plain [T,Cout]x[Cout,T] matmul with no XLU transpose.
    kt_ref[...] = qkv[:, cout_p:2 * cout_p].T.astype(kt_ref.dtype)
    v_ref[...] = qkv[:, 2 * cout_p:].astype(v_ref.dtype)


# ----------- kernel 2: flash-style attention + output projection --------------

def _attn_kernel(q_ref, kt_ref, v_ref, bias_ref, wo_ref, bo_ref, out_ref,
                 m_scr, l_scr, acc_scr, *, bf16_softmax):
    ki = pl.program_id(1)

    @pl.when(ki == 0)
    def _init():
        m_scr[...] = jnp.full(m_scr.shape, _NEG_INF, m_scr.dtype)
        l_scr[...] = jnp.zeros_like(l_scr)
        acc_scr[...] = jnp.zeros_like(acc_scr)

    # s[T, T] = (Q / sqrt(8)) @ K^T  (scale folded into Q weights at trace time).
    s = jnp.dot(q_ref[...], kt_ref[...], preferred_element_type=jnp.float32)
    s = s + bias_ref[...]          # additive mask: 0 for valid cols, -1e30 padded

    # Online-softmax update.
    m_new = jnp.maximum(m_scr[...], jnp.max(s, axis=-1, keepdims=True))
    alpha = jnp.exp(m_scr[...] - m_new)
    if bf16_softmax:
        # bf16 EUP exp (v6e/v7x); p feeds the PV matmul directly with no extra cast.
        p = jnp.exp((s - m_new).astype(jnp.bfloat16))
        p_sum = jnp.sum(p.astype(jnp.float32), axis=-1, keepdims=True)
    else:
        p = jnp.exp(s - m_new)
        p_sum = jnp.sum(p, axis=-1, keepdims=True)
    l_scr[...] = alpha * l_scr[...] + p_sum
    acc_scr[...] = alpha * acc_scr[...] + jnp.dot(
        p.astype(v_ref.dtype), v_ref[...], preferred_element_type=jnp.float32)
    m_scr[...] = m_new

    @pl.when(ki == pl.num_programs(1) - 1)
    def _finalize():
        l = l_scr[...]
        inv = pl.reciprocal(l, approx=True)
        inv = inv * (2.0 - l * inv)          # one Newton step -> ~f32 accuracy
        z = (acc_scr[...] * inv).astype(wo_ref.dtype)
        out = jnp.dot(z, wo_ref[...],
                      preferred_element_type=jnp.float32) + bo_ref[...]
        out_ref[...] = out.astype(out_ref.dtype)


# ------------------------------- wrapper ---------------------------------------

def ultimus_block(x, params, *, compute_dtype=jnp.bfloat16, block_n=1024,
                  bf16_softmax=False, vmem_limit_bytes=None):
    """x: [N, in_channels] f32. params: dict of transposed weights & biases."""
    N, Cin = x.shape
    Cout = params["wk_t"].shape[1]

    # Lane-dense channel padding; T a multiple of 128 (covers bf16 sublane packing
    # and makes the K^T / bias / output blocks lane-aligned).
    Cin_p = _round_up(Cin, 128)
    Cout_p = _round_up(Cout, 128)
    # Default block_n=1024 keeps the [T,T] f32 temporaries (4 MiB each) inside
    # v7x's 64 MiB VMEM; on v5e/v6e (128 MiB VMEM) block_n=2048 is reasonable.
    T = min(_round_up(N, 128), max(128, (block_n // 128) * 128))
    N_pad = _round_up(N, T)
    n_tiles = N_pad // T

    scale = 1.0 / (8.0 ** 0.5)   # reference hard-codes sqrt(8), not sqrt(d_k)

    def pad2(a, r, c):
        return jnp.pad(a, ((0, r - a.shape[0]), (0, c - a.shape[1])))

    xp = pad2(x, N_pad, Cin_p).astype(compute_dtype)
    # Fused projection weights [Cin_p, 3*Cout_p]: [Q (pre-scaled) | K | V].
    wqkv = jnp.concatenate(
        [pad2(params["wq_t"], Cin_p, Cout_p) * scale,
         pad2(params["wk_t"], Cin_p, Cout_p),
         pad2(params["wv_t"], Cin_p, Cout_p)], axis=1).astype(compute_dtype)
    bqkv = jnp.concatenate(
        [pad2(params["bq"], 1, Cout_p) * scale,
         pad2(params["bk"], 1, Cout_p),
         pad2(params["bv"], 1, Cout_p)], axis=1).astype(jnp.float32)
    wo = pad2(params["wo_t"], Cout_p, Cin_p).astype(compute_dtype)
    bo = pad2(params["bo"], 1, Cin_p).astype(jnp.float32)

    # Additive KV mask row: 0 for valid columns, -1e30 for padded columns.
    bias = jnp.where(jnp.arange(N_pad) < N, 0.0, _NEG_INF
                     ).astype(jnp.float32)[None, :]

    cbytes = jnp.dtype(compute_dtype).itemsize
    obytes = jnp.dtype(x.dtype).itemsize
    use_bf16_softmax = bool(bf16_softmax) and (
        jnp.dtype(compute_dtype) == jnp.dtype(jnp.bfloat16))

    # ---- 1) QKV projection: each x tile is projected exactly once -------------
    proj_vmem = (2 * (T * Cin_p * cbytes + Cin_p * 3 * Cout_p * cbytes
                      + 3 * Cout_p * 4 + 3 * T * Cout_p * cbytes)
                 + 2 * T * 3 * Cout_p * 4        # f32 matmul result + transpose tmp
                 + (8 << 20))                    # Mosaic internal-scratch margin
    q, kt, v = pl.pallas_call(
        functools.partial(_qkv_proj_kernel, cout_p=Cout_p),
        out_shape=(jax.ShapeDtypeStruct((N_pad, Cout_p), compute_dtype),
                   jax.ShapeDtypeStruct((Cout_p, N_pad), compute_dtype),
                   jax.ShapeDtypeStruct((N_pad, Cout_p), compute_dtype)),
        grid_spec=pltpu.PrefetchScalarGridSpec(
            num_scalar_prefetch=0,
            grid=(n_tiles,),
            in_specs=[
                pl.BlockSpec((T, Cin_p), lambda i: (i, 0)),            # x tile
                pl.BlockSpec((Cin_p, 3 * Cout_p), lambda i: (0, 0)),   # wqkv
                pl.BlockSpec((1, 3 * Cout_p), lambda i: (0, 0)),       # bqkv
            ],
            out_specs=[
                pl.BlockSpec((T, Cout_p), lambda i: (i, 0)),           # Q
                pl.BlockSpec((Cout_p, T), lambda i: (0, i)),           # K^T
                pl.BlockSpec((T, Cout_p), lambda i: (i, 0)),           # V
            ],
        ),
        compiler_params=pltpu.CompilerParams(
            dimension_semantics=("parallel",),
            vmem_limit_bytes=min(max(proj_vmem, 32 << 20), 64 << 20),
        ),
        cost_estimate=pl.CostEstimate(
            flops=2 * N_pad * Cin_p * 3 * Cout_p,
            transcendentals=0,
            bytes_accessed=(N_pad * Cin_p + 3 * Cin_p * Cout_p
                            + 3 * N_pad * Cout_p) * cbytes),
    )(xp, wqkv, bqkv)

    # ---- 2) flash attention + Out projection -----------------------------------
    if vmem_limit_bytes is None:
        vmem_limit_bytes = (
            2 * (T * Cout_p * cbytes          # Q tile (resident across ki)
                 + Cout_p * T * cbytes        # K^T tile (double-buffered)
                 + T * Cout_p * cbytes        # V tile (double-buffered)
                 + T * 4                      # bias row
                 + Cout_p * Cin_p * cbytes    # wo
                 + Cin_p * 4                  # bo
                 + T * Cin_p * obytes)        # out tile
            + T * Cout_p * 4 + 2 * T * 4      # acc / m / l scratch
            + 3 * T * T * 4                   # s, p temporaries + headroom
            + (8 << 20))                      # Mosaic internal-scratch margin
        vmem_limit_bytes = min(max(vmem_limit_bytes, 32 << 20), 64 << 20)

    flops = 2 * N_pad * N_pad * Cout_p * 2 + 2 * N_pad * Cout_p * Cin_p
    bytes_accessed = (N_pad * Cout_p * cbytes                  # Q (read once/tile)
                      + 2 * n_tiles * N_pad * Cout_p * cbytes  # K^T,V per query tile
                      + Cout_p * Cin_p * cbytes + Cin_p * 4
                      + N_pad * Cin_p * obytes)                # output

    out = pl.pallas_call(
        functools.partial(_attn_kernel, bf16_softmax=use_bf16_softmax),
        out_shape=jax.ShapeDtypeStruct((N_pad, Cin_p), x.dtype),
        grid_spec=pltpu.PrefetchScalarGridSpec(
            num_scalar_prefetch=0,
            grid=(n_tiles, n_tiles),
            in_specs=[
                pl.BlockSpec((T, Cout_p), lambda qi, ki: (qi, 0)),      # Q
                pl.BlockSpec((Cout_p, T), lambda qi, ki: (0, ki)),      # K^T
                pl.BlockSpec((T, Cout_p), lambda qi, ki: (ki, 0)),      # V
                pl.BlockSpec((1, T), lambda qi, ki: (0, ki)),           # mask bias
                pl.BlockSpec((Cout_p, Cin_p), lambda qi, ki: (0, 0)),   # wo
                pl.BlockSpec((1, Cin_p), lambda qi, ki: (0, 0)),        # bo
            ],
            out_specs=pl.BlockSpec((T, Cin_p), lambda qi, ki: (qi, 0)),
            scratch_shapes=[
                pltpu.VMEM((T, 1), jnp.float32),        # running max m
                pltpu.VMEM((T, 1), jnp.float32),        # running denom l
                pltpu.VMEM((T, Cout_p), jnp.float32),   # output accumulator
            ],
        ),
        compiler_params=pltpu.CompilerParams(
            dimension_semantics=("parallel", "arbitrary"),
            vmem_limit_bytes=vmem_limit_bytes,
        ),
        cost_estimate=pl.CostEstimate(flops=flops, transcendentals=N_pad * N_pad,
                                      bytes_accessed=bytes_accessed),
    )(q, kt, v, bias, wo, bo)

    return out[:N, :Cin]


# ------------------------------ reference & init -------------------------------

def init_params(key, in_channels, out_channels):
    """Deterministic init mimicking nn.Linear shapes: weight [out, in], bias [out]."""
    ks = jax.random.split(key, 8)

    def lin(kw, kb, fan_in, fan_out):
        bound = 1.0 / (fan_in ** 0.5)
        w = jax.random.uniform(kw, (fan_out, fan_in), jnp.float32, -bound, bound)
        b = jax.random.uniform(kb, (fan_out,), jnp.float32, -bound, bound)
        return w, b

    Wk, bk = lin(ks[0], ks[1], in_channels, out_channels)
    Wq, bq = lin(ks[2], ks[3], in_channels, out_channels)
    Wv, bv = lin(ks[4], ks[5], in_channels, out_channels)
    Wo, bo = lin(ks[6], ks[7], out_channels, in_channels)
    return {
        "wk_t": Wk.T, "bk": bk[None, :],
        "wq_t": Wq.T, "bq": bq[None, :],
        "wv_t": Wv.T, "bv": bv[None, :],
        "wo_t": Wo.T, "bo": bo[None, :],
    }


def ultimus_ref(x, p):
    K = x @ p["wk_t"] + p["bk"]
    Q = x @ p["wq_t"] + p["bq"]
    V = x @ p["wv_t"] + p["bv"]
    AM = jax.nn.softmax((Q @ K.T) / (8.0 ** 0.5), axis=1)
    Z = AM @ V
    return Z @ p["wo_t"] + p["bo"]


if __name__ == "__main__":
    key = jax.random.PRNGKey(0)
    kx, kp = jax.random.split(key)

    # Small shapes consistent with the module.
    N, in_channels, out_channels = 8, 32, 16
    x = jax.random.normal(kx, (N, in_channels), jnp.float32)
    params = init_params(kp, in_channels, out_channels)
    ref = ultimus_ref(x, params)

    # f32 MXU operands: tight tolerance.
    out_f32 = ultimus_block(x, params, compute_dtype=jnp.float32)
    jax.block_until_ready(out_f32)
    assert out_f32.shape == (N, in_channels)
    assert jnp.allclose(out_f32, ref, atol=5e-3, rtol=5e-3), "f32 mismatch vs reference"

    # Default bf16 MXU operands (f32 accumulation / softmax): relaxed tolerance.
    out_bf16 = ultimus_block(x, params)
    jax.block_until_ready(out_bf16)
    assert jnp.allclose(out_bf16, ref, atol=3e-2, rtol=3e-2), "bf16 mismatch vs reference"

    # Optional bf16 softmax probabilities (bf16 EUP exp; intended for v6e/v7x).
    out_bf16s = ultimus_block(x, params, bf16_softmax=True)
    jax.block_until_ready(out_bf16s)
    assert out_bf16s.shape == (N, in_channels)
    assert jnp.max(jnp.abs(out_bf16s - ref)) < 0.1, "bf16-softmax mismatch vs reference"

    # Multi-tile grid (2x2) with masked padded KV columns (N not a tile multiple).
    N2 = 200
    k2x, k2p = jax.random.split(jax.random.PRNGKey(1))
    x2 = jax.random.normal(k2x, (N2, in_channels), jnp.float32)
    p2 = init_params(k2p, in_channels, out_channels)
    out2 = ultimus_block(x2, p2, compute_dtype=jnp.float32, block_n=128)
    jax.block_until_ready(out2)
    ref2 = ultimus_ref(x2, p2)
    assert out2.shape == (N2, in_channels)
    assert jnp.allclose(out2, ref2, atol=5e-3, rtol=5e-3), "tiled/masked mismatch vs reference"

    print("KERNEL_OK")
</pallas_src>

<mosaic_0001>
module attributes {stable_mosaic.version = 11 : i64} {
  func.func @_qkv_proj_kernel(%arg0: i32, %arg1: memref<128x128xf32, #tpu.memory_space<vmem>>, %arg2: memref<128x384xf32, #tpu.memory_space<vmem>>, %arg3: memref<1x384xf32, #tpu.memory_space<vmem>>, %arg4: memref<128x128xf32, #tpu.memory_space<vmem>>, %arg5: memref<128x128xf32, #tpu.memory_space<vmem>>, %arg6: memref<128x128xf32, #tpu.memory_space<vmem>>) attributes {dimension_semantics = [#tpu.dimension_semantics<parallel>], iteration_bounds = array<i64: 1>, scalar_prefetch = 0 : i64, scratch_operands = 0 : i64, tpu.core_type = #tpu.core_type<tc>, window_params = [{transform_indices = @transform_0, window_bounds = array<i64: 128, 128>}, {pipeline_mode = #tpu.pipeline_mode<synchronous>, transform_indices = @transform_1, window_bounds = array<i64: 128, 384>}, {pipeline_mode = #tpu.pipeline_mode<synchronous>, transform_indices = @transform_2, window_bounds = array<i64: 1, 384>}, {transform_indices = @transform_3, window_bounds = array<i64: 128, 128>}, {transform_indices = @transform_4, window_bounds = array<i64: 128, 128>}, {transform_indices = @transform_5, window_bounds = array<i64: 128, 128>}]} {
    %c0 = arith.constant 0 : index
    %c0_0 = arith.constant 0 : index
    %0 = vector.load %arg1[%c0, %c0_0] : memref<128x128xf32, #tpu.memory_space<vmem>>, vector<128x128xf32>
    %c0_1 = arith.constant 0 : index
    %c0_2 = arith.constant 0 : index
    %1 = vector.load %arg2[%c0_1, %c0_2] : memref<128x384xf32, #tpu.memory_space<vmem>>, vector<128x384xf32>
    %cst = arith.constant dense<0.000000e+00> : vector<128x384xf32>
    %2 = tpu.matmul %0, %1, %cst {dimension_numbers = #tpu.dot_dimension_numbers<[1], [0], [0], [1], [0, 0, 1, 1], [], []>} : vector<128x128xf32>, vector<128x384xf32>, vector<128x384xf32> -> vector<128x384xf32>
    %c0_3 = arith.constant 0 : index
    %c0_4 = arith.constant 0 : index
    %3 = vector.load %arg3[%c0_3, %c0_4] : memref<1x384xf32, #tpu.memory_space<vmem>>, vector<1x384xf32>
    %4 = vector.broadcast %3 : vector<1x384xf32> to vector<128x384xf32>
    %5 = arith.addf %2, %4 : vector<128x384xf32>
    %6 = vector.extract_strided_slice %5 {offsets = [0, 0], sizes = [128, 128], strides = [1, 1]} : vector<128x384xf32> to vector<128x128xf32>
    %c0_5 = arith.constant 0 : index
    %c0_6 = arith.constant 0 : index
    %7 = vector.load %arg4[%c0_5, %c0_6] : memref<128x128xf32, #tpu.memory_space<vmem>>, vector<128x128xf32>
    tpu.vector_store %arg4[%c0_5, %c0_6], %6 {strides = array<i32>} : memref<128x128xf32, #tpu.memory_space<vmem>>, vector<128x128xf32>,
    %8 = vector.extract_strided_slice %5 {offsets = [0, 128], sizes = [128, 128], strides = [1, 1]} : vector<128x384xf32> to vector<128x128xf32>
    %9 = tpu.transpose %8, [1, 0] : vector<128x128xf32> -> vector<128x128xf32>
    %c0_7 = arith.constant 0 : index
    %c0_8 = arith.constant 0 : index
    %10 = vector.load %arg5[%c0_7, %c0_8] : memref<128x128xf32, #tpu.memory_space<vmem>>, vector<128x128xf32>
    tpu.vector_store %arg5[%c0_7, %c0_8], %9 {strides = array<i32>} : memref<128x128xf32, #tpu.memory_space<vmem>>, vector<128x128xf32>,
    %11 = vector.extract_strided_slice %5 {offsets = [0, 256], sizes = [128, 128], strides = [1, 1]} : vector<128x384xf32> to vector<128x128xf32>
    %c0_9 = arith.constant 0 : index
    %c0_10 = arith.constant 0 : index
    %12 = vector.load %arg6[%c0_9, %c0_10] : memref<128x128xf32, #tpu.memory_space<vmem>>, vector<128x128xf32>
    tpu.vector_store %arg6[%c0_9, %c0_10], %11 {strides = array<i32>} : memref<128x128xf32, #tpu.memory_space<vmem>>, vector<128x128xf32>,
    return
  }
  func.func @transform_0(%arg0: i32) -> (i32, i32) {
    %c0_i32 = arith.constant 0 : i32
    %c0_i32_0 = arith.constant 0 : i32
    return %arg0, %c0_i32 : i32, i32
  }
  func.func @transform_1(%arg0: i32) -> (i32, i32) {
    %c0_i32 = arith.constant 0 : i32
    %c0_i32_0 = arith.constant 0 : i32
    %c0_i32_1 = arith.constant 0 : i32
    return %c0_i32, %c0_i32_0 : i32, i32
  }
  func.func @transform_2(%arg0: i32) -> (i32, i32) {
    %c0_i32 = arith.constant 0 : i32
    %c0_i32_0 = arith.constant 0 : i32
    %c0_i32_1 = arith.constant 0 : i32
    return %c0_i32, %c0_i32_0 : i32, i32
  }
  func.func @transform_3(%arg0: i32) -> (i32, i32) {
    %c0_i32 = arith.constant 0 : i32
    %c0_i32_0 = arith.constant 0 : i32
    return %arg0, %c0_i32 : i32, i32
  }
  func.func @transform_4(%arg0: i32) -> (i32, i32) {
    %c0_i32 = arith.constant 0 : i32
    %c0_i32_0 = arith.constant 0 : i32
    return %c0_i32, %arg0 : i32, i32
  }
  func.func @transform_5(%arg0: i32) -> (i32, i32) {
    %c0_i32 = arith.constant 0 : i32
    %c0_i32_0 = arith.constant 0 : i32
    return %arg0, %c0_i32 : i32, i32
  }
}

</mosaic_0001>

<llo_original>
// kernel: tpu_custom_call.1
$region0: #{tpu_custom_call.1}
  #allocation0 [shape = 'u32[]', space=smem, size = 0x4, offset = 0x4, fixed_abs, tag = 'smem constant byte address 0x4 - core index']
  #allocation1 [shape = 'u32[144,128]{1,0:T(1,128)}', space=vmem, size = 0x12000, scoped, tag = 'internal scratch']
  %s0 = inlined_call_operand.hbm [shape: f32[128,128], index: 0, kind: input, shape index: {}]
  %s1 = inlined_call_operand.hbm [shape: f32[128,384], index: 1, kind: input, shape index: {}]
  %s2 = inlined_call_operand.vmem [shape: f32[1,384], index: 2, kind: input, shape index: {}]
  %s3 = inlined_call_operand.hbm [shape: f32[128,128], index: 3, kind: output, shape index: {0}]
  %s4 = inlined_call_operand.hbm [shape: f32[128,128], index: 4, kind: output, shape index: {1}]
  %s5 = inlined_call_operand.hbm [shape: f32[128,128], index: 5, kind: output, shape index: {2}]
  %6 = xla_tuple %s3, %s4, %s5
  %s7 = sld [smem:[#allocation0]]
  $region46: #{tpu_custom_call.1} parent=0
    _
  %s9 = ssub.s32 1, %s7
  %s10 = scalar_select 0, %s9, %s7
  $region1: #{tpu_custom_call.1} parent=0
    #allocation2 [shape = 'u8[65536]{0}', space=vmem, size = 0x10000, scoped, tag = 'input window, operand 0, single buffered']
    #allocation3 [shape = 's32[1]{0}', space=sflag, size = 0x4, scoped, tag = 'scoped memory for tpu_custom_call.1']
    #allocation4 [shape = 's32[1]{0}', space=sflag, size = 0x4, scoped, tag = 'scoped memory for tpu_custom_call.1']
    #allocation5 [shape = 'u8[196608]{0}', space=vmem, size = 0x30000, scoped, tag = 'input window, operand 1, single buffered']
    #allocation6 [shape = 's32[1]{0}', space=sflag, size = 0x4, scoped, tag = 'scoped memory for tpu_custom_call.1']
    #allocation7 [shape = 'u8[65536]{0}', space=vmem, size = 0x10000, scoped, tag = 'output window, operand 0, single buffered']
    #allocation8 [shape = 'u8[65536]{0}', space=vmem, size = 0x10000, scoped, tag = 'output window, operand 1, single buffered']
    #allocation9 [shape = 's32[1]{0}', space=sflag, size = 0x4, scoped, tag = 'scoped memory for tpu_custom_call.1']
    #allocation10 [shape = 'u8[65536]{0}', space=vmem, size = 0x10000, scoped, tag = 'output window, operand 2, single buffered']
    %11 = vsyncpa [#allocation3], 0
    %12 = vsyncpa [#allocation6], 0
    %13 = vsyncpa [#allocation4], 0
    %14 = vsyncpa [#allocation9], 0
    // Predicated region
    $region2: #{tpu_custom_call.1} parent=1 // pred_check
      _
    $region3: #{tpu_custom_call.1} parent=1 // pred_check_branch
      %16 = sbr.rel (0) target = $region5
    $region4: #{tpu_custom_call.1} parent=1 // pred_region
      %s18 = ssub.s32 2048, 2048
      %19 = vsyncadd [#allocation3], %s18
      %s20 = sshll.u32 [#allocation2], 4
      %s21 = int_to_ptr.vmem [resolvable:$true] %s20
      %26 = dma.hbm_to_vmem [thread:$0]  %s0, 2048, %s21, [#allocation3], 128, 128, 8
    $region5: #{tpu_custom_call.1} parent=1 // pred_fallthru
      _
    // Predicated region
    $region6: #{tpu_custom_call.1} parent=1 // pred_check
      _
    $region7: #{tpu_custom_call.1} parent=1 // pred_check_branch
      %28 = sbr.rel (0) target = $region9
    $region8: #{tpu_custom_call.1} parent=1 // pred_region
      %s30 = ssub.s32 6144, 6144
      %31 = vsyncadd [#allocation6], %s30
      %s32 = sshll.u32 [#allocation5], 4
      %s33 = int_to_ptr.vmem [resolvable:$true] %s32
      %38 = dma.hbm_to_vmem [thread:$0]  %s1, 6144, %s33, [#allocation6], 384, 384, 24
    $region9: #{tpu_custom_call.1} parent=1 // pred_fallthru
      _
    // Predicated region
    $region10: #{tpu_custom_call.1} parent=1 // pred_check
      _
    $region11: #{tpu_custom_call.1} parent=1 // pred_check_branch
      %40 = sbr.rel (0) target = $region13
    $region12: #{tpu_custom_call.1} parent=1 // pred_region
      _
    $region13: #{tpu_custom_call.1} parent=1 // pred_fallthru
      _
    // Predicated region
    $region14: #{tpu_custom_call.1} parent=1 // pred_check
      _
    $region15: #{tpu_custom_call.1} parent=1 // pred_check_branch
      %42 = sbr.rel (0) target = $region17
    $region16: #{tpu_custom_call.1} parent=1 // pred_region
      %43 = dma.done [#allocation3], 2048
    $region17: #{tpu_custom_call.1} parent=1 // pred_fallthru
      _
    // Predicated region
    $region18: #{tpu_custom_call.1} parent=1 // pred_check
      _
    $region19: #{tpu_custom_call.1} parent=1 // pred_check_branch
      %45 = sbr.rel (0) target = $region21
    $region20: #{tpu_custom_call.1} parent=1 // pred_region
      %46 = dma.done [#allocation6], 6144
    $region21: #{tpu_custom_call.1} parent=1 // pred_fallthru
      _
    %v47 = vld [vmem:[#allocation2] sm:$0xff]
    %v48 = vld [vmem:[#allocation2 + $0x8] sm:$0xff]
    %v49 = vld [vmem:[#allocation2 + $0x10] sm:$0xff]
    %v50 = vld [vmem:[#allocation2 + $0x18] sm:$0xff]
    %v51 = vld [vmem:[#allocation2 + $0x20] sm:$0xff]
    %v52 = vld [vmem:[#allocation2 + $0x28] sm:$0xff]
    %v53 = vld [vmem:[#allocation2 + $0x30] sm:$0xff]
    %v54 = vld [vmem:[#allocation2 + $0x38] sm:$0xff]
    %v55 = vld [vmem:[#allocation2 + $0x40] sm:$0xff]
    %v56 = vld [vmem:[#allocation2 + $0x48] sm:$0xff]
    %v57 = vld [vmem:[#allocation2 + $0x50] sm:$0xff]
    %v58 = vld [vmem:[#allocation2 + $0x58] sm:$0xff]
    %v59 = vld [vmem:[#allocation2 + $0x60] sm:$0xff]
    %v60 = vld [vmem:[#allocation2 + $0x68] sm:$0xff]
    %v61 = vld [vmem:[#allocation2 + $0x70] sm:$0xff]
    %v62 = vld [vmem:[#allocation2 + $0x78] sm:$0xff]
    %v63 = vld [vmem:[#allocation5] sm:$0xff]
    %v64 = vld [vmem:[#allocation5 + $0x8] sm:$0xff]
    %v65 = vld [vmem:[#allocation5 + $0x10] sm:$0xff]
    %v66 = vld [vmem:[#allocation5 + $0x18] sm:$0xff]
    %v67 = vld [vmem:[#allocation5 + $0x20] sm:$0xff]
    %v68 = vld [vmem:[#allocation5 + $0x28] sm:$0xff]
    %v69 = vld [vmem:[#allocation5 + $0x30] sm:$0xff]
    %v70 = vld [vmem:[#allocation5 + $0x38] sm:$0xff]
    %v71 = vld [vmem:[#allocation5 + $0x40] sm:$0xff]
    %v72 = vld [vmem:[#allocation5 + $0x48] sm:$0xff]
    %v73 = vld [vmem:[#allocation5 + $0x50] sm:$0xff]
    %v74 = vld [vmem:[#allocation5 + $0x58] sm:$0xff]
    %v75 = vld [vmem:[#allocation5 + $0x60] sm:$0xff]
    %v76 = vld [vmem:[#allocation5 + $0x68] sm:$0xff]
    %v77 = vld [vmem:[#allocation5 + $0x70] sm:$0xff]
    %v78 = vld [vmem:[#allocation5 + $0x78] sm:$0xff]
    %v79 = vld [vmem:[#allocation5 + $0x80] sm:$0xff]
    %v80 = vld [vmem:[#allocation5 + $0x88] sm:$0xff]
    %v81 = vld [vmem:[#allocation5 + $0x90] sm:$0xff]
    %v82 = vld [vmem:[#allocation5 + $0x98] sm:$0xff]
    %v83 = vld [vmem:[#allocation5 + $0xa0] sm:$0xff]
    %v84 = vld [vmem:[#allocation5 + $0xa8] sm:$0xff]
    %v85 = vld [vmem:[#allocation5 + $0xb0] sm:$0xff]
    %v86 = vld [vmem:[#allocation5 + $0xb8] sm:$0xff]
    %v87 = vld [vmem:[#allocation5 + $0xc0] sm:$0xff]
    %v88 = vld [vmem:[#allocation5 + $0xc8] sm:$0xff]
    %v89 = vld [vmem:[#allocation5 + $0xd0] sm:$0xff]
    %v90 = vld [vmem:[#allocation5 + $0xd8] sm:$0xff]
    %v91 = vld [vmem:[#allocation5 + $0xe0] sm:$0xff]
    %v92 = vld [vmem:[#allocation5 + $0xe8] sm:$0xff]
    %v93 = vld [vmem:[#allocation5 + $0xf0] sm:$0xff]
    %v94 = vld [vmem:[#allocation5 + $0xf8] sm:$0xff]
    %v95 = vld [vmem:[#allocation5 + $0x100] sm:$0xff]
    %v96 = vld [vmem:[#allocation5 + $0x108] sm:$0xff]
    %v97 = vld [vmem:[#allocation5 + $0x110] sm:$0xff]
    %v98 = vld [vmem:[#allocation5 + $0x118] sm:$0xff]
    %v99 = vld [vmem:[#allocation5 + $0x120] sm:$0xff]
    %v100 = vld [vmem:[#allocation5 + $0x128] sm:$0xff]
    %v101 = vld [vmem:[#allocation5 + $0x130] sm:$0xff]
    %v102 = vld [vmem:[#allocation5 + $0x138] sm:$0xff]
    %v103 = vld [vmem:[#allocation5 + $0x140] sm:$0xff]
    %v104 = vld [vmem:[#allocation5 + $0x148] sm:$0xff]
    %v105 = vld [vmem:[#allocation5 + $0x150] sm:$0xff]
    %v106 = vld [vmem:[#allocation5 + $0x158] sm:$0xff]
    %v107 = vld [vmem:[#allocation5 + $0x160] sm:$0xff]
    %v108 = vld [vmem:[#allocation5 + $0x168] sm:$0xff]
    %v109 = vld [vmem:[#allocation5 + $0x170] sm:$0xff]
    %v110 = vld [vmem:[#allocation5 + $0x178] sm:$0xff]
    %v111 = vld [vmem:[%s2] sm:$0x7]
    %v113 = vlaneseq
    %v114 = vshrl.u32 %v113, 7
    %v115 = vsub.s32 0, %v114
    %v116 = vrot.slane %v111, %v115
    %v117 = vlaneseq
    %v118 = vshrl.u32 %v117, 7
    %v119 = vsub.s32 1, %v118
    %v120 = vrot.slane %v111, %v119
    %v121 = vlaneseq
    %v122 = vshrl.u32 %v121, 7
    %v123 = vsub.s32 2, %v122
    %v124 = vrot.slane %v111, %v123
    %128 = vmatprep.subr.mxu0 %v64
    %129 = vmatpush1.msra.mxu0 %v63
    %130 = vmatprep.subr.mxu0 %v67
    %131 = vmatpush1.msra.mxu0 %v66
    %132 = vmatprep.subr.mxu0 %v70
    %133 = vmatpush1.msra.mxu0 %v69
    %134 = vmatprep.subr.mxu0 %v73
    %135 = vmatpush1.msra.mxu0 %v72
    %136 = vmatprep.subr.mxu0 %v76
    %137 = vmatpush1.msra.mxu0 %v75
    %138 = vmatprep.subr.mxu0 %v79
    %139 = vmatpush1.msra.mxu0 %v78
    %140 = vmatprep.subr.mxu0 %v82
    %141 = vmatpush1.msra.mxu0 %v81
    %142 = vmatprep.subr.mxu0 %v85
    %143 = vmatpush1.msra.mxu0 %v84
    %144 = vmatprep.subr.mxu0 %v88
    %145 = vmatpush1.msra.mxu0 %v87
    %146 = vmatprep.subr.mxu0 %v91
    %147 = vmatpush1.msra.mxu0 %v90
    %148 = vmatprep.subr.mxu0 %v94
    %149 = vmatpush1.msra.mxu0 %v93
    %150 = vmatprep.subr.mxu0 %v97
    %151 = vmatpush1.msra.mxu0 %v96
    %152 = vmatprep.subr.mxu0 %v100
    %153 = vmatpush1.msra.mxu0 %v99
    %154 = vmatprep.subr.mxu0 %v103
    %155 = vmatpush1.msra.mxu0 %v102
    %156 = vmatprep.subr.mxu0 %v106
    %157 = vmatpush1.msra.mxu0 %v105
    %158 = vmatprep.subr.mxu0 %v109
    %159 = vmatpush1.msra.mxu0 %v108
    %160 = vmatprep.subr.mxu0 0.0
    %161 = vmatpush1.msra.mxu0 0.0
    %162 = vmatprep.subr.mxu0 0.0
    %163 = vmatpush1.msra.mxu0 0.0
    %164 = vmatprep.subr.mxu0 0.0
    %165 = vmatpush1.msra.mxu0 0.0
    %166 = vmatprep.subr.mxu0 0.0
    %167 = vmatpush1.msra.mxu0 0.0
    %168 = vmatprep.subr.mxu0 0.0
    %169 = vmatpush1.msra.mxu0 0.0
    %170 = vmatprep.subr.mxu0 0.0
    %171 = vmatpush1.msra.mxu0 0.0
    %172 = vmatprep.subr.mxu0 0.0
    %173 = vmatpush1.msra.mxu0 0.0
    %174 = vmatprep.subr.mxu0 0.0
    %175 = vmatpush1.msra.mxu0 0.0
    %176 = vmatprep.subr.mxu0 0.0
    %177 = vmatpush1.msra.mxu0 0.0
    %178 = vmatprep.subr.mxu0 0.0
    %179 = vmatpush1.msra.mxu0 0.0
    %180 = vmatprep.subr.mxu0 0.0
    %181 = vmatpush1.msra.mxu0 0.0
    %182 = vmatprep.subr.mxu0 0.0
    %183 = vmatpush1.msra.mxu0 0.0
    %184 = vmatprep.subr.mxu0 0.0
    %185 = vmatpush1.msra.mxu0 0.0
    %186 = vmatprep.subr.mxu0 0.0
    %187 = vmatpush1.msra.mxu0 0.0
    %188 = vmatprep.subr.mxu0 0.0
    %189 = vmatpush1.msra.mxu0 0.0
    %190 = vmatprep.subr.mxu0 0.0
    %191 = vmatpush1.msra.mxu0 0.0
    %192 = vmatprep.mubr.f32.mxu0 0.0
    %193 = vmatmul.mubr.f32.gmra.mrb[0].mxu0 %v47
    %v194 = vpop.f32.mrb[0].mxu0
    %v195 = vadd.f32 %v116, %v194
    %v196 = vpop.f32.mrb[0].mxu0
    %v197 = vadd.f32 %v120, %v196
    %198 = vmatprep.mubr.f32.mxu0 0.0
    %199 = vmatmul.mubr.f32.gmra.mrb[0].mxu0 %v48
    %v200 = vpop.f32.mrb[0].mxu0
    %v201 = vadd.f32 %v116, %v200
    %v202 = vpop.f32.mrb[0].mxu0
    %v203 = vadd.f32 %v120, %v202
    %204 = vmatprep.mubr.f32.mxu0 0.0
    %205 = vmatmul.mubr.f32.gmra.mrb[0].mxu0 %v49
    %v206 = vpop.f32.mrb[0].mxu0
    %v207 = vadd.f32 %v116, %v206
    %v208 = vpop.f32.mrb[0].mxu0
    %v209 = vadd.f32 %v120, %v208
    %210 = vmatprep.mubr.f32.mxu0 0.0
    %211 = vmatmul.mubr.f32.gmra.mrb[0].mxu0 %v50
    %v212 = vpop.f32.mrb[0].mxu0
    %v213 = vadd.f32 %v116, %v212
    %v214 = vpop.f32.mrb[0].mxu0
    %v215 = vadd.f32 %v120, %v214
    %216 = vmatprep.mubr.f32.mxu0 0.0
    %217 = vmatmul.mubr.f32.gmra.mrb[0].mxu0 %v51
    %v218 = vpop.f32.mrb[0].mxu0
    %v219 = vadd.f32 %v116, %v218
    %v220 = vpop.f32.mrb[0].mxu0
    %v221 = vadd.f32 %v120, %v220
    %222 = vmatprep.mubr.f32.mxu0 0.0
    %223 = vmatmul.mubr.f32.gmra.mrb[0].mxu0 %v52
    %v224 = vpop.f32.mrb[0].mxu0
    %v225 = vadd.f32 %v116, %v224
    %v226 = vpop.f32.mrb[0].mxu0
    %v227 = vadd.f32 %v120, %v226
    %228 = vmatprep.mubr.f32.mxu0 0.0
    %229 = vmatmul.mubr.f32.gmra.mrb[0].mxu0 %v53
    %v230 = vpop.f32.mrb[0].mxu0
    %v231 = vadd.f32 %v116, %v230
    %v232 = vpop.f32.mrb[0].mxu0
    %v233 = vadd.f32 %v120, %v232
    %234 = vmatprep.mubr.f32.mxu0 0.0
    %235 = vmatmul.mubr.f32.gmra.mrb[0].mxu0 %v54
    %v236 = vpop.f32.mrb[0].mxu0
    %v237 = vadd.f32 %v116, %v236
    %v238 = vpop.f32.mrb[0].mxu0
    %v239 = vadd.f32 %v120, %v238
    %240 = vmatprep.mubr.f32.mxu0 0.0
    %241 = vmatmul.mubr.f32.gmra.mrb[0].mxu0 %v55
    %v242 = vpop.f32.mrb[0].mxu0
    %v243 = vadd.f32 %v116, %v242
    %v244 = vpop.f32.mrb[0].mxu0
    %v245 = vadd.f32 %v120, %v244
    %246 = vmatprep.mubr.f32.mxu0 0.0
    %247 = vmatmul.mubr.f32.gmra.mrb[0].mxu0 %v56
    %v248 = vpop.f32.mrb[0].mxu0
    %v249 = vadd.f32 %v116, %v248
    %v250 = vpop.f32.mrb[0].mxu0
    %v251 = vadd.f32 %v120, %v250
    %252 = vmatprep.mubr.f32.mxu0 0.0
    %253 = vmatmul.mubr.f32.gmra.mrb[0].mxu0 %v57
    %v254 = vpop.f32.mrb[0].mxu0
    %v255 = vadd.f32 %v116, %v254
    %v256 = vpop.f32.mrb[0].mxu0
    %v257 = vadd.f32 %v120, %v256
    %258 = vmatprep.mubr.f32.mxu0 0.0
    %259 = vmatmul.mubr.f32.gmra.mrb[0].mxu0 %v58
    %v260 = vpop.f32.mrb[0].mxu0
    %v261 = vadd.f32 %v116, %v260
    %v262 = vpop.f32.mrb[0].mxu0
    %v263 = vadd.f32 %v120, %v262
    %264 = vmatprep.mubr.f32.mxu0 0.0
    %265 = vmatmul.mubr.f32.gmra.mrb[0].mxu0 %v59
    %v266 = vpop.f32.mrb[0].mxu0
    %v267 = vadd.f32 %v116, %v266
    %v268 = vpop.f32.mrb[0].mxu0
    %v269 = vadd.f32 %v120, %v268
    %270 = vmatprep.mubr.f32.mxu0 0.0
    %271 = vmatmul.mubr.f32.gmra.mrb[0].mxu0 %v60
    %v272 = vpop.f32.mrb[0].mxu0
    %v273 = vadd.f32 %v116, %v272
    %v274 = vpop.f32.mrb[0].mxu0
    %v275 = vadd.f32 %v120, %v274
    %276 = vmatprep.mubr.f32.mxu0 0.0
    %277 = vmatmul.mubr.f32.gmra.mrb[0].mxu0 %v61
    %v278 = vpop.f32.mrb[0].mxu0
    %v279 = vadd.f32 %v116, %v278
    %v280 = vpop.f32.mrb[0].mxu0
    %v281 = vadd.f32 %v120, %v280
    %282 = vmatprep.mubr.f32.mxu0 0.0
    %283 = vmatmul.mubr.f32.gmra.mrb[0].mxu0 %v62
    %v284 = vpop.f32.mrb[0].mxu0
    %v285 = vadd.f32 %v116, %v284
    %v286 = vpop.f32.mrb[0].mxu0
    %v287 = vadd.f32 %v120, %v286
    %288 = vdwg.mxu0
    %289 = vmatprep.subr.mxu0 0.0
    %290 = vmatpush1.msra.mxu0 %v65
    %291 = vmatprep.subr.mxu0 0.0
    %292 = vmatpush1.msra.mxu0 %v68
    %293 = vmatprep.subr.mxu0 0.0
    %294 = vmatpush1.msra.mxu0 %v71
    %295 = vmatprep.subr.mxu0 0.0
    %296 = vmatpush1.msra.mxu0 %v74
    %297 = vmatprep.subr.mxu0 0.0
    %298 = vmatpush1.msra.mxu0 %v77
    %299 = vmatprep.subr.mxu0 0.0
    %300 = vmatpush1.msra.mxu0 %v80
    %301 = vmatprep.subr.mxu0 0.0
    %302 = vmatpush1.msra.mxu0 %v83
    %303 = vmatprep.subr.mxu0 0.0
    %304 = vmatpush1.msra.mxu0 %v86
    %305 = vmatprep.subr.mxu0 0.0
    %306 = vmatpush1.msra.mxu0 %v89
    %307 = vmatprep.subr.mxu0 0.0
    %308 = vmatpush1.msra.mxu0 %v92
    %309 = vmatprep.subr.mxu0 0.0
    %310 = vmatpush1.msra.mxu0 %v95
    %311 = vmatprep.subr.mxu0 0.0
    %312 = vmatpush1.msra.mxu0 %v98
    %313 = vmatprep.subr.mxu0 0.0
    %314 = vmatpush1.msra.mxu0 %v101
    %315 = vmatprep.subr.mxu0 0.0
    %316 = vmatpush1.msra.mxu0 %v104
    %317 = vmatprep.subr.mxu0 0.0
    %318 = vmatpush1.msra.mxu0 %v107
    %319 = vmatprep.subr.mxu0 0.0
    %320 = vmatpush1.msra.mxu0 %v110
    %321 = vmatprep.subr.mxu0 0.0
    %322 = vmatpush1.msra.mxu0 0.0
    %323 = vmatprep.subr.mxu0 0.0
    %324 = vmatpush1.msra.mxu0 0.0
    %325 = vmatprep.subr.mxu0 0.0
    %326 = vmatpush1.msra.mxu0 0.0
    %327 = vmatprep.subr.mxu0 0.0
    %328 = vmatpush1.msra.mxu0 0.0
    %329 = vmatprep.subr.mxu0 0.0
    %330 = vmatpush1.msra.mxu0 0.0
    %331 = vmatprep.subr.mxu0 0.0
    %332 = vmatpush1.msra.mxu0 0.0
    %333 = vmatprep.subr.mxu0 0.0
    %334 = vmatpush1.msra.mxu0 0.0
    %335 = vmatprep.subr.mxu0 0.0
    %336 = vmatpush1.msra.mxu0 0.0
    %337 = vmatprep.subr.mxu0 0.0
    %338 = vmatpush1.msra.mxu0 0.0
    %339 = vmatprep.subr.mxu0 0.0
    %340 = vmatpush1.msra.mxu0 0.0
    %341 = vmatprep.subr.mxu0 0.0
    %342 = vmatpush1.msra.mxu0 0.0
    %343 = vmatprep.subr.mxu0 0.0
    %344 = vmatpush1.msra.mxu0 0.0
    %345 = vmatprep.subr.mxu0 0.0
    %346 = vmatpush1.msra.mxu0 0.0
    %347 = vmatprep.subr.mxu0 0.0
    %348 = vmatpush1.msra.mxu0 0.0
    %349 = vmatprep.subr.mxu0 0.0
    %350 = vmatpush1.msra.mxu0 0.0
    %351 = vmatprep.subr.mxu0 0.0
    %352 = vmatpush1.msra.mxu0 0.0
    %353 = vmatprep.mubr.f32.mxu0 0.0
    %354 = vmatmul.mubr.f32.gmra.mrb[0].mxu0 %v47
    %v355 = vpop.f32.mrb[0].mxu0
    %v356 = vadd.f32 %v124, %v355
    %v357 = vpop.f32.mrb[0].mxu0
    %358 = vmatprep.mubr.f32.mxu0 0.0
    %359 = vmatmul.mubr.f32.gmra.mrb[0].mxu0 %v48
    %v360 = vpop.f32.mrb[0].mxu0
    %v361 = vadd.f32 %v124, %v360
    %v362 = vpop.f32.mrb[0].mxu0
    %363 = vmatprep.mubr.f32.mxu0 0.0
    %364 = vmatmul.mubr.f32.gmra.mrb[0].mxu0 %v49
    %v365 = vpop.f32.mrb[0].mxu0
    %v366 = vadd.f32 %v124, %v365
    %v367 = vpop.f32.mrb[0].mxu0
    %368 = vmatprep.mubr.f32.mxu0 0.0
    %369 = vmatmul.mubr.f32.gmra.mrb[0].mxu0 %v50
    %v370 = vpop.f32.mrb[0].mxu0
    %v371 = vadd.f32 %v124, %v370
    %v372 = vpop.f32.mrb[0].mxu0
    %373 = vmatprep.mubr.f32.mxu0 0.0
    %374 = vmatmul.mubr.f32.gmra.mrb[0].mxu0 %v51
    %v375 = vpop.f32.mrb[0].mxu0
    %v376 = vadd.f32 %v124, %v375
    %v377 = vpop.f32.mrb[0].mxu0
    %378 = vmatprep.mubr.f32.mxu0 0.0
    %379 = vmatmul.mubr.f32.gmra.mrb[0].mxu0 %v52
    %v380 = vpop.f32.mrb[0].mxu0
    %v381 = vadd.f32 %v124, %v380
    %v382 = vpop.f32.mrb[0].mxu0
    %383 = vmatprep.mubr.f32.mxu0 0.0
    %384 = vmatmul.mubr.f32.gmra.mrb[0].mxu0 %v53
    %v385 = vpop.f32.mrb[0].mxu0
    %v386 = vadd.f32 %v124, %v385
    %v387 = vpop.f32.mrb[0].mxu0
    %388 = vmatprep.mubr.f32.mxu0 0.0
    %389 = vmatmul.mubr.f32.gmra.mrb[0].mxu0 %v54
    %v390 = vpop.f32.mrb[0].mxu0
    %v391 = vadd.f32 %v124, %v390
    %v392 = vpop.f32.mrb[0].mxu0
    %393 = vmatprep.mubr.f32.mxu0 0.0
    %394 = vmatmul.mubr.f32.gmra.mrb[0].mxu0 %v55
    %v395 = vpop.f32.mrb[0].mxu0
    %v396 = vadd.f32 %v124, %v395
    %v397 = vpop.f32.mrb[0].mxu0
    %398 = vmatprep.mubr.f32.mxu0 0.0
    %399 = vmatmul.mubr.f32.gmra.mrb[0].mxu0 %v56
    %v400 = vpop.f32.mrb[0].mxu0
    %v401 = vadd.f32 %v124, %v400
    %v402 = vpop.f32.mrb[0].mxu0
    %403 = vmatprep.mubr.f32.mxu0 0.0
    %404 = vmatmul.mubr.f32.gmra.mrb[0].mxu0 %v57
    %v405 = vpop.f32.mrb[0].mxu0
    %v406 = vadd.f32 %v124, %v405
    %v407 = vpop.f32.mrb[0].mxu0
    %408 = vmatprep.mubr.f32.mxu0 0.0
    %409 = vmatmul.mubr.f32.gmra.mrb[0].mxu0 %v58
    %v410 = vpop.f32.mrb[0].mxu0
    %v411 = vadd.f32 %v124, %v410
    %v412 = vpop.f32.mrb[0].mxu0
    %413 = vmatprep.mubr.f32.mxu0 0.0
    %414 = vmatmul.mubr.f32.gmra.mrb[0].mxu0 %v59
    %v415 = vpop.f32.mrb[0].mxu0
    %v416 = vadd.f32 %v124, %v415
    %v417 = vpop.f32.mrb[0].mxu0
    %418 = vmatprep.mubr.f32.mxu0 0.0
    %419 = vmatmul.mubr.f32.gmra.mrb[0].mxu0 %v60
    %v420 = vpop.f32.mrb[0].mxu0
    %v421 = vadd.f32 %v124, %v420
    %v422 = vpop.f32.mrb[0].mxu0
    %423 = vmatprep.mubr.f32.mxu0 0.0
    %424 = vmatmul.mubr.f32.gmra.mrb[0].mxu0 %v61
    %v425 = vpop.f32.mrb[0].mxu0
    %v426 = vadd.f32 %v124, %v425
    %v427 = vpop.f32.mrb[0].mxu0
    %428 = vmatprep.mubr.f32.mxu0 0.0
    %429 = vmatmul.mubr.f32.gmra.mrb[0].mxu0 %v62
    %v430 = vpop.f32.mrb[0].mxu0
    %v431 = vadd.f32 %v124, %v430
    %v432 = vpop.f32.mrb[0].mxu0
    %433 = vdwg.mxu0
    %434 = vst [vmem:[#allocation7] sm:$0xff] %v195
    %435 = vst [vmem:[#allocation7 + $0x8] sm:$0xff] %v201
    %436 = vst [vmem:[#allocation7 + $0x10] sm:$0xff] %v207
    %437 = vst [vmem:[#allocation7 + $0x18] sm:$0xff] %v213
    %438 = vst [vmem:[#allocation7 + $0x20] sm:$0xff] %v219
    %439 = vst [vmem:[#allocation7 + $0x28] sm:$0xff] %v225
    %440 = vst [vmem:[#allocation7 + $0x30] sm:$0xff] %v231
    %441 = vst [vmem:[#allocation7 + $0x38] sm:$0xff] %v237
    %442 = vst [vmem:[#allocation7 + $0x40] sm:$0xff] %v243
    %443 = vst [vmem:[#allocation7 + $0x48] sm:$0xff] %v249
    %444 = vst [vmem:[#allocation7 + $0x50] sm:$0xff] %v255
    %445 = vst [vmem:[#allocation7 + $0x58] sm:$0xff] %v261
    %446 = vst [vmem:[#allocation7 + $0x60] sm:$0xff] %v267
    %447 = vst [vmem:[#allocation7 + $0x68] sm:$0xff] %v273
    %448 = vst [vmem:[#allocation7 + $0x70] sm:$0xff] %v279
    %449 = vst [vmem:[#allocation7 + $0x78] sm:$0xff] %v285
    %450 = vxpose.xlu0.b32.start [1/16] %v197, 128
    %451 = vxpose.xlu0.b32.cont [2/16] %v203, 128
    %452 = vxpose.xlu0.b32.cont [3/16] %v209, 128
    %453 = vxpose.xlu0.b32.cont [4/16] %v215, 128
    %454 = vxpose.xlu0.b32.cont [5/16] %v221, 128
    %455 = vxpose.xlu0.b32.cont [6/16] %v227, 128
    %456 = vxpose.xlu0.b32.cont [7/16] %v233, 128
    %457 = vxpose.xlu0.b32.cont [8/16] %v239, 128
    %458 = vxpose.xlu0.b32.cont [9/16] %v245, 128
    %459 = vxpose.xlu0.b32.cont [10/16] %v251, 128
    %460 = vxpose.xlu0.b32.cont [11/16] %v257, 128
    %461 = vxpose.xlu0.b32.cont [12/16] %v263, 128
    %462 = vxpose.xlu0.b32.cont [13/16] %v269, 128
    %463 = vxpose.xlu0.b32.cont [14/16] %v275, 128
    %464 = vxpose.xlu0.b32.cont [15/16] %v281, 128
    %465 = vxpose.xlu0.b32.end [16/16] %v287, 128
    %v466 = vpop.trf.xlu0
    %v467 = vpop.trf.xlu0
    %v468 = vpop.trf.xlu0
    %v469 = vpop.trf.xlu0
    %v470 = vpop.trf.xlu0
    %v471 = vpop.trf.xlu0
    %v472 = vpop.trf.xlu0
    %v473 = vpop.trf.xlu0
    %v474 = vpop.trf.xlu0
    %v475 = vpop.trf.xlu0
    %v476 = vpop.trf.xlu0
    %v477 = vpop.trf.xlu0
    %v478 = vpop.trf.xlu0
    %v479 = vpop.trf.xlu0
    %v480 = vpop.trf.xlu0
    %v481 = vpop.trf.xlu0
    %482 = vst [vmem:[#allocation8] sm:$0xff] %v466
    %483 = vst [vmem:[#allocation8 + $0x8] sm:$0xff] %v467
    %484 = vst [vmem:[#allocation8 + $0x10] sm:$0xff] %v468
    %485 = vst [vmem:[#allocation8 + $0x18] sm:$0xff] %v469
    %486 = vst [vmem:[#allocation8 + $0x20] sm:$0xff] %v470
    %487 = vst [vmem:[#allocation8 + $0x28] sm:$0xff] %v471
    %488 = vst [vmem:[#allocation8 + $0x30] sm:$0xff] %v472
    %489 = vst [vmem:[#allocation8 + $0x38] sm:$0xff] %v473
    %490 = vst [vmem:[#allocation8 + $0x40] sm:$0xff] %v474
    %491 = vst [vmem:[#allocation8 + $0x48] sm:$0xff] %v475
    %492 = vst [vmem:[#allocation8 + $0x50] sm:$0xff] %v476
    %493 = vst [vmem:[#allocation8 + $0x58] sm:$0xff] %v477
    %494 = vst [vmem:[#allocation8 + $0x60] sm:$0xff] %v478
    %495 = vst [vmem:[#allocation8 + $0x68] sm:$0xff] %v479
    %496 = vst [vmem:[#allocation8 + $0x70] sm:$0xff] %v480
    %497 = vst [vmem:[#allocation8 + $0x78] sm:$0xff] %v481
    %498 = vst [vmem:[#allocation10] sm:$0xff] %v356
    %499 = vst [vmem:[#allocation10 + $0x8] sm:$0xff] %v361
    %500 = vst [vmem:[#allocation10 + $0x10] sm:$0xff] %v366
    %501 = vst [vmem:[#allocation10 + $0x18] sm:$0xff] %v371
    %502 = vst [vmem:[#allocation10 + $0x20] sm:$0xff] %v376
    %503 = vst [vmem:[#allocation10 + $0x28] sm:$0xff] %v381
    %504 = vst [vmem:[#allocation10 + $0x30] sm:$0xff] %v386
    %505 = vst [vmem:[#allocation10 + $0x38] sm:$0xff] %v391
    %506 = vst [vmem:[#allocation10 + $0x40] sm:$0xff] %v396
    %507 = vst [vmem:[#allocation10 + $0x48] sm:$0xff] %v401
    %508 = vst [vmem:[#allocation10 + $0x50] sm:$0xff] %v406
    %509 = vst [vmem:[#allocation10 + $0x58] sm:$0xff] %v411
    %510 = vst [vmem:[#allocation10 + $0x60] sm:$0xff] %v416
    %511 = vst [vmem:[#allocation10 + $0x68] sm:$0xff] %v421
    %512 = vst [vmem:[#allocation10 + $0x70] sm:$0xff] %v426
    %513 = vst [vmem:[#allocation10 + $0x78] sm:$0xff] %v431
    // Predicated region
    $region22: #{tpu_custom_call.1} parent=1 // pred_check
      _
    $region23: #{tpu_custom_call.1} parent=1 // pred_check_branch
      %515 = sbr.rel (0) target = $region25
    $region24: #{tpu_custom_call.1} parent=1 // pred_region
      %s517 = ssub.s32 2048, 2048
      %518 = vsyncadd [#allocation4], %s517
      %s519 = sshll.u32 [#allocation7], 4
      %s520 = int_to_ptr.vmem [resolvable:$true] %s519
      %525 = dma.vmem_to_hbm [thread:$0]  %s520, 2048, %s3, [#allocation4], 128, 128, 8
    $region25: #{tpu_custom_call.1} parent=1 // pred_fallthru
      _
    // Predicated region
    $region26: #{tpu_custom_call.1} parent=1 // pred_check
      _
    $region27: #{tpu_custom_call.1} parent=1 // pred_check_branch
      %527 = sbr.rel (0) target = $region29
    $region28: #{tpu_custom_call.1} parent=1 // pred_region
      %s529 = ssub.s32 2048, 2048
      %530 = vsyncadd [#allocation9], %s529
      %s531 = sshll.u32 [#allocation8], 4
      %s532 = int_to_ptr.vmem [resolvable:$true] %s531
      %537 = dma.vmem_to_hbm [thread:$0]  %s532, 2048, %s4, [#allocation9], 128, 128, 8
    $region29: #{tpu_custom_call.1} parent=1 // pred_fallthru
      _
    // Predicated region
    $region30: #{tpu_custom_call.1} parent=1 // pred_check
      _
    $region31: #{tpu_custom_call.1} parent=1 // pred_check_branch
      %539 = sbr.rel (0) target = $region33
    $region32: #{tpu_custom_call.1} parent=1 // pred_region
      %s541 = ssub.s32 2048, 2048
      %542 = vsyncadd [#allocation9], %s541
      %s543 = sshll.u32 [#allocation10], 4
      %s544 = int_to_ptr.vmem [resolvable:$true] %s543
      %549 = dma.vmem_to_hbm [thread:$0]  %s544, 2048, %s5, [#allocation9], 128, 128, 8
    $region33: #{tpu_custom_call.1} parent=1 // pred_fallthru
      _
    // Predicated region
    $region34: #{tpu_custom_call.1} parent=1 // pred_check
      _
    $region35: #{tpu_custom_call.1} parent=1 // pred_check_branch
      %551 = sbr.rel (0) target = $region37
    $region36: #{tpu_custom_call.1} parent=1 // pred_region
      %552 = dma.done [#allocation4], 2048
    $region37: #{tpu_custom_call.1} parent=1 // pred_fallthru
      _
    // Predicated region
    $region38: #{tpu_custom_call.1} parent=1 // pred_check
      _
    $region39: #{tpu_custom_call.1} parent=1 // pred_check_branch
      %554 = sbr.rel (0) target = $region41
    $region40: #{tpu_custom_call.1} parent=1 // pred_region
      %555 = dma.done [#allocation9], 2048
    $region41: #{tpu_custom_call.1} parent=1 // pred_fallthru
      _
    // Predicated region
    $region42: #{tpu_custom_call.1} parent=1 // pred_check
      _
    $region43: #{tpu_custom_call.1} parent=1 // pred_check_branch
      %557 = sbr.rel (0) target = $region45
    $region44: #{tpu_custom_call.1} parent=1 // pred_region
      %558 = dma.done [#allocation9], 2048
    $region45: #{tpu_custom_call.1} parent=1 // pred_fallthru
      _
    %559 = vsyncpa [#allocation3], 1
    %560 = vsyncpa [#allocation6], 1
    %561 = vsyncpa [#allocation4], 1
    %562 = vsyncpa [#allocation9], 1

</llo_original>
